<compile_context>
chip_gen: v6e
topology: v6e:2x2x1
jax: 0.10.0
libtpu: 0.0.40
codegen_flags: <defaults>
</compile_context>

<pallas_src>
import functools

import jax
import jax.numpy as jnp
from jax.experimental import pallas as pl
from jax.experimental.pallas import tpu as pltpu

BN_EPS = 1e-5
LANE = 128


def _round_up(v, m):
    return ((v + m - 1) // m) * m


def _usable_vmem_bytes():
    """Per-TensorCore VMEM capacity minus headroom (v7x: ~56 MiB, v5e/v6e: ~112 MiB)."""
    cap = None
    try:
        info = pltpu.get_tpu_info()
        cap = int(getattr(info, "vmem_capacity_bytes", 0)) or None
    except Exception:
        cap = None
    if cap is None:
        cap = 64 << 20  # conservative fallback = smallest (v7x) per-TC VMEM
    return cap - max(cap // 8, 8 << 20)


def linear_bnr_kernel(x_ref, wt_ref, gamma_ref, beta_ref, o_ref, *scratch,
                      n_rows, tk, x_resident):
    # Grid: (j = F_out tile [parallel across TCs], k = F_in tile [reduction / arbitrary]).
    #   x_ref:  (N, F_in_p) if x_resident else (N, TK)
    #   wt_ref: (TK, TN)          gamma_ref / beta_ref: (1, TN)
    #   o_ref:  (N, TN)           scratch: optional (N, TN) f32 acc (only when o isn't f32)
    k = pl.program_id(1)
    # Accumulate straight into the resident f32 output block when possible (saves N*TN*4 VMEM).
    acc_ref = scratch[0] if scratch else o_ref

    if x_resident:
        off = pl.multiple_of(k * tk, LANE)
        xk = x_ref[:, pl.ds(off, tk)]
    else:
        xk = x_ref[...]

    part = jnp.dot(xk, wt_ref[...], preferred_element_type=jnp.float32)

    @pl.when(k == 0)
    def _():
        acc_ref[...] = part            # first-step overwrite: no separate zero-init pass

    @pl.when(k > 0)
    def _():
        acc_ref[...] += part

    @pl.when(k == pl.num_programs(1) - 1)
    def _():
        h = acc_ref[...]                                       # (N, TN), f32
        inv_n = jnp.float32(1.0 / n_rows)
        # Centered two-pass batch statistics (f32): avoids E[x^2]-E[x]^2 cancellation.
        mean = jnp.sum(h, axis=0, keepdims=True) * inv_n
        d = h - mean
        var = jnp.sum(d * d, axis=0, keepdims=True) * inv_n    # biased var (BN training mode)
        scale = gamma_ref[...] * jax.lax.rsqrt(var + BN_EPS)
        o_ref[...] = jnp.maximum(d * scale + beta_ref[...], 0.0).astype(o_ref.dtype)


def make_linear_bnr(weight, gamma, beta, *, tn=512, tk=1024,
                    compute_dtype=jnp.bfloat16, out_dtype=jnp.float32,
                    vmem_limit_bytes=None):
    """Prepare parameters once (transpose + lane-dense padding) and return an apply(x) fn.

    weight: (F_out, F_in) in nn.Linear layout.  The linear bias is intentionally not taken:
    under training-mode BatchNorm the batch-mean subtraction cancels it exactly.
    TODO(synk): int8 weight path (per-channel scales folded into the BN scale) would halve
    weight HBM traffic again on v5e/v6e (not a drop-in on v7x, fp8-only MXU).
    """
    f_out, f_in = weight.shape
    usable_vmem = _usable_vmem_bytes()

    tk = min(tk, _round_up(f_in, LANE))
    tn = min(tn, _round_up(f_out, LANE))
    # Guarantee >= 2 F_out tiles when possible so the "parallel" j axis can be sharded across
    # v7x's two TensorCores (no-op for v5e/v6e single-TC chips and for narrow F_out).
    f_out_128 = _round_up(f_out, LANE)
    if f_out_128 // tn < 2 and f_out_128 >= 2 * LANE:
        tn = _round_up(f_out_128 // 2, LANE)
    f_in_p = _round_up(f_in, tk)
    f_out_p = _round_up(f_out, tn)

    # Parameter prep (transpose + zero-pad to lane-dense tiles) hoisted out of the hot path.
    wt = jnp.zeros((f_in_p, f_out_p), compute_dtype)
    wt = wt.at[:f_in, :f_out].set(weight.T.astype(compute_dtype))
    g = jnp.zeros((1, f_out_p), jnp.float32).at[0, :f_out].set(gamma.astype(jnp.float32))
    b = jnp.zeros((1, f_out_p), jnp.float32).at[0, :f_out].set(beta.astype(jnp.float32))

    grid_j, grid_k = f_out_p // tn, f_in_p // tk
    in_bytes = jnp.dtype(compute_dtype).itemsize
    out_bytes = jnp.dtype(out_dtype).itemsize
    acc_in_out = jnp.dtype(out_dtype) == jnp.dtype(jnp.float32)

    def apply(x):
        n, fi = x.shape
        assert fi == f_in, f"expected {f_in} input features, got {fi}"
        # TODO(synk): for N large enough that an (N, tn) slab no longer fits VMEM (~10K bf16
        # rows on v7x), switch to a two-pass batch-tiled structure: pass 1 accumulates global
        # per-feature sum/sumsq, pass 2 re-streams x to apply scale/offset.
        xp = x.astype(compute_dtype)
        if f_in_p != f_in:
            xp = jnp.pad(xp, ((0, 0), (0, f_in_p - f_in)))

        # Keep the whole x slab resident in VMEM when it fits: it is then DMA'd once instead of
        # once per F_out tile (x re-read dominates HBM traffic whenever N > tn).
        x_resident = (grid_j > 1) and (2 * n * f_in_p * in_bytes) <= usable_vmem // 3
        x_cols = f_in_p if x_resident else tk

        vmem = vmem_limit_bytes
        if vmem is None:
            vmem = (2 * n * x_cols * in_bytes          # x tiles (double-buffered)
                    + 2 * tk * tn * in_bytes           # W^T tiles (double-buffered)
                    + 2 * n * tn * out_bytes           # output (doubles as f32 accumulator)
                    + (0 if acc_in_out else n * tn * 4)
                    + 4 * tn * 4 * 2                   # gamma / beta
                    + (4 << 20))                       # headroom
        # Never request more scoped VMEM than the chip actually has (v7x = 64 MiB physical).
        vmem = min(max(int(vmem), 32 << 20), usable_vmem)

        x_spec = (pl.BlockSpec((n, f_in_p), lambda j, k: (0, 0)) if x_resident
                  else pl.BlockSpec((n, tk), lambda j, k: (0, k)))
        # NOTE: output stays default double-buffered so tile-j writeback overlaps tile-(j+1)
        # accumulation; dropping the separate acc scratch already gives the v7x VMEM win.

        out = pl.pallas_call(
            functools.partial(linear_bnr_kernel, n_rows=n, tk=tk, x_resident=x_resident),
            out_shape=jax.ShapeDtypeStruct((n, f_out_p), out_dtype),
            grid_spec=pltpu.PrefetchScalarGridSpec(
                num_scalar_prefetch=0,
                grid=(grid_j, grid_k),
                in_specs=[
                    x_spec,                                        # x
                    pl.BlockSpec((tk, tn), lambda j, k: (k, j)),   # W^T
                    pl.BlockSpec((1, tn), lambda j, k: (0, j)),    # gamma
                    pl.BlockSpec((1, tn), lambda j, k: (0, j)),    # beta
                ],
                out_specs=pl.BlockSpec((n, tn), lambda j, k: (0, j)),
                scratch_shapes=(() if acc_in_out
                                else (pltpu.VMEM((n, tn), jnp.float32),)),
            ),
            compiler_params=pltpu.CompilerParams(
                dimension_semantics=("parallel", "arbitrary"),
                vmem_limit_bytes=int(vmem),
            ),
            cost_estimate=pl.CostEstimate(
                flops=2 * n * f_in_p * f_out_p,
                transcendentals=f_out_p,
                bytes_accessed=((1 if x_resident else grid_j) * n * f_in_p * in_bytes
                                + f_in_p * f_out_p * in_bytes
                                + n * f_out_p * out_bytes),
            ),
        )(xp, wt, g, b)
        return out[:, :f_out]

    return apply


def reference(x, weight, bias, gamma, beta):
    h = x @ weight.T + bias
    mean = jnp.mean(h, axis=0, keepdims=True)
    var = jnp.mean((h - mean) ** 2, axis=0, keepdims=True)
    h = (h - mean) / jnp.sqrt(var + BN_EPS)
    h = h * gamma + beta
    return jnp.maximum(h, 0.0)


if __name__ == "__main__":
    # Small shapes consistent with the module: batch=8, in_features=32, out_features=16
    N, F_IN, F_OUT = 8, 32, 16

    key = jax.random.PRNGKey(0)
    kx, kw = jax.random.split(key)

    x = jax.random.normal(kx, (N, F_IN), dtype=jnp.float32)

    # Deterministic parameter init matching the module's __init__:
    #   xavier_uniform_ on linear.weight, zeros on linear.bias, BatchNorm1d: weight=1, bias=0.
    xavier_bound = (6.0 / (F_IN + F_OUT)) ** 0.5
    weight = jax.random.uniform(
        kw, (F_OUT, F_IN), minval=-xavier_bound, maxval=xavier_bound, dtype=jnp.float32
    )
    bias = jnp.zeros((F_OUT,), dtype=jnp.float32)   # canceled by training-mode BN anyway
    gamma = jnp.ones((F_OUT,), dtype=jnp.float32)
    beta = jnp.zeros((F_OUT,), dtype=jnp.float32)

    ref = reference(x, weight, bias, gamma, beta)

    # Full-precision path (compute_dtype=f32): tight correctness check.
    out_f32 = jax.block_until_ready(
        make_linear_bnr(weight, gamma, beta, compute_dtype=jnp.float32)(x))
    assert out_f32.shape == (N, F_OUT)
    assert jnp.allclose(out_f32, ref, atol=1e-4, rtol=1e-4), "f32 kernel mismatch vs reference"

    # Default fast path (bf16 x/W, f32 accumulation + f32 BN epilogue): looser tolerance.
    out_bf16 = jax.block_until_ready(make_linear_bnr(weight, gamma, beta)(x))
    assert out_bf16.shape == (N, F_OUT)
    assert jnp.allclose(out_bf16, ref, atol=7e-2, rtol=7e-2), "bf16 kernel mismatch vs reference"

    print("KERNEL_OK")
</pallas_src>

<mosaic_0001>
module attributes {stable_mosaic.version = 11 : i64} {
  func.func @linear_bnr_kernel(%arg0: i32, %arg1: i32, %arg2: memref<8x128xf32, #tpu.memory_space<vmem>>, %arg3: memref<128x128xf32, #tpu.memory_space<vmem>>, %arg4: memref<1x128xf32, #tpu.memory_space<vmem>>, %arg5: memref<1x128xf32, #tpu.memory_space<vmem>>, %arg6: memref<8x128xf32, #tpu.memory_space<vmem>>) attributes {dimension_semantics = [#tpu.dimension_semantics<parallel>, #tpu.dimension_semantics<arbitrary>], iteration_bounds = array<i64: 1, 1>, scalar_prefetch = 0 : i64, scratch_operands = 0 : i64, tpu.core_type = #tpu.core_type<tc>, window_params = [{transform_indices = @transform_0, window_bounds = array<i64: 8, 128>}, {transform_indices = @transform_1, window_bounds = array<i64: 128, 128>}, {transform_indices = @transform_2, window_bounds = array<i64: 1, 128>}, {transform_indices = @transform_3, window_bounds = array<i64: 1, 128>}, {transform_indices = @transform_4, window_bounds = array<i64: 8, 128>}]} {
    %c0 = arith.constant 0 : index
    %c0_0 = arith.constant 0 : index
    %0 = vector.load %arg2[%c0, %c0_0] : memref<8x128xf32, #tpu.memory_space<vmem>>, vector<8x128xf32>
    %c0_1 = arith.constant 0 : index
    %c0_2 = arith.constant 0 : index
    %1 = vector.load %arg3[%c0_1, %c0_2] : memref<128x128xf32, #tpu.memory_space<vmem>>, vector<128x128xf32>
    %cst = arith.constant dense<0.000000e+00> : vector<8x128xf32>
    %2 = tpu.matmul %0, %1, %cst {dimension_numbers = #tpu.dot_dimension_numbers<[1], [0], [0], [1], [0, 0, 1, 1], [], []>} : vector<8x128xf32>, vector<128x128xf32>, vector<8x128xf32> -> vector<8x128xf32>
    %c0_i32 = arith.constant 0 : i32
    %3 = arith.cmpi eq, %arg1, %c0_i32 : i32
    %4 = arith.extui %3 : i1 to i32
    %c0_i32_3 = arith.constant 0 : i32
    %5 = arith.cmpi ne, %4, %c0_i32_3 : i32
    scf.if %5 {
      %c0_8 = arith.constant 0 : index
      %c0_9 = arith.constant 0 : index
      %12 = vector.load %arg6[%c0_8, %c0_9] : memref<8x128xf32, #tpu.memory_space<vmem>>, vector<8x128xf32>
      tpu.vector_store %arg6[%c0_8, %c0_9], %2 {strides = array<i32>} : memref<8x128xf32, #tpu.memory_space<vmem>>, vector<8x128xf32>,
    } else {
    }
    %c0_i32_4 = arith.constant 0 : i32
    %6 = arith.cmpi sgt, %arg1, %c0_i32_4 : i32
    %7 = arith.extui %6 : i1 to i32
    %c0_i32_5 = arith.constant 0 : i32
    %8 = arith.cmpi ne, %7, %c0_i32_5 : i32
    scf.if %8 {
      %c0_8 = arith.constant 0 : index
      %c0_9 = arith.constant 0 : index
      %12 = vector.load %arg6[%c0_8, %c0_9] : memref<8x128xf32, #tpu.memory_space<vmem>>, vector<8x128xf32>
      %13 = arith.addf %12, %2 : vector<8x128xf32>
      %c0_10 = arith.constant 0 : index
      %c0_11 = arith.constant 0 : index
      %14 = vector.load %arg6[%c0_10, %c0_11] : memref<8x128xf32, #tpu.memory_space<vmem>>, vector<8x128xf32>
      tpu.vector_store %arg6[%c0_10, %c0_11], %13 {strides = array<i32>} : memref<8x128xf32, #tpu.memory_space<vmem>>, vector<8x128xf32>,
    } else {
    }
    %c0_i32_6 = arith.constant 0 : i32
    %9 = arith.cmpi eq, %arg1, %c0_i32_6 : i32
    %10 = arith.extui %9 : i1 to i32
    %c0_i32_7 = arith.constant 0 : i32
    %11 = arith.cmpi ne, %10, %c0_i32_7 : i32
    scf.if %11 {
      %c0_8 = arith.constant 0 : index
      %c0_9 = arith.constant 0 : index
      %12 = vector.load %arg6[%c0_8, %c0_9] : memref<8x128xf32, #tpu.memory_space<vmem>>, vector<8x128xf32>
      %cst_10 = arith.constant dense<0.000000e+00> : vector<128xf32>
      %13 = vector.multi_reduction <add>, %12, %cst_10 [0] : vector<8x128xf32> to vector<128xf32>
      %14 = vector.shape_cast %13 : vector<128xf32> to vector<1x128xf32>
      %cst_11 = arith.constant 1.250000e-01 : f32
      %15 = vector.broadcast %cst_11 : f32 to vector<1x128xf32>
      %16 = arith.mulf %14, %15 : vector<1x128xf32>
      %17 = vector.broadcast %16 : vector<1x128xf32> to vector<8x128xf32>
      %18 = arith.subf %12, %17 : vector<8x128xf32>
      %19 = arith.mulf %18, %18 : vector<8x128xf32>
      %cst_12 = arith.constant dense<0.000000e+00> : vector<128xf32>
      %20 = vector.multi_reduction <add>, %19, %cst_12 [0] : vector<8x128xf32> to vector<128xf32>
      %21 = vector.shape_cast %20 : vector<128xf32> to vector<1x128xf32>
      %cst_13 = arith.constant 1.250000e-01 : f32
      %22 = vector.broadcast %cst_13 : f32 to vector<1x128xf32>
      %23 = arith.mulf %21, %22 : vector<1x128xf32>
      %c0_14 = arith.constant 0 : index
      %c0_15 = arith.constant 0 : index
      %24 = vector.load %arg4[%c0_14, %c0_15] : memref<1x128xf32, #tpu.memory_space<vmem>>, vector<1x128xf32>
      %cst_16 = arith.constant 9.99999974E-6 : f32
      %25 = vector.broadcast %cst_16 : f32 to vector<1x128xf32>
      %26 = arith.addf %23, %25 : vector<1x128xf32>
      %27 = math.rsqrt %26 : vector<1x128xf32>
      %28 = arith.mulf %24, %27 : vector<1x128xf32>
      %29 = vector.broadcast %28 : vector<1x128xf32> to vector<8x128xf32>
      %30 = arith.mulf %18, %29 : vector<8x128xf32>
      %c0_17 = arith.constant 0 : index
      %c0_18 = arith.constant 0 : index
      %31 = vector.load %arg5[%c0_17, %c0_18] : memref<1x128xf32, #tpu.memory_space<vmem>>, vector<1x128xf32>
      %32 = vector.broadcast %31 : vector<1x128xf32> to vector<8x128xf32>
      %33 = arith.addf %30, %32 : vector<8x128xf32>
      %cst_19 = arith.constant 0.000000e+00 : f32
      %34 = vector.broadcast %cst_19 : f32 to vector<8x128xf32>
      %35 = arith.maximumf %33, %34 : vector<8x128xf32>
      %c0_20 = arith.constant 0 : index
      %c0_21 = arith.constant 0 : index
      %36 = vector.load %arg6[%c0_20, %c0_21] : memref<8x128xf32, #tpu.memory_space<vmem>>, vector<8x128xf32>
      tpu.vector_store %arg6[%c0_20, %c0_21], %35 {strides = array<i32>} : memref<8x128xf32, #tpu.memory_space<vmem>>, vector<8x128xf32>,
    } else {
    }
    return
  }
  func.func @transform_0(%arg0: i32, %arg1: i32) -> (i32, i32) {
    %c0_i32 = arith.constant 0 : i32
    %c0_i32_0 = arith.constant 0 : i32
    return %c0_i32, %arg1 : i32, i32
  }
  func.func @transform_1(%arg0: i32, %arg1: i32) -> (i32, i32) {
    %c0_i32 = arith.constant 0 : i32
    return %arg1, %arg0 : i32, i32
  }
  func.func @transform_2(%arg0: i32, %arg1: i32) -> (i32, i32) {
    %c0_i32 = arith.constant 0 : i32
    %c0_i32_0 = arith.constant 0 : i32
    return %c0_i32, %arg0 : i32, i32
  }
  func.func @transform_3(%arg0: i32, %arg1: i32) -> (i32, i32) {
    %c0_i32 = arith.constant 0 : i32
    %c0_i32_0 = arith.constant 0 : i32
    return %c0_i32, %arg0 : i32, i32
  }
  func.func @transform_4(%arg0: i32, %arg1: i32) -> (i32, i32) {
    %c0_i32 = arith.constant 0 : i32
    %c0_i32_0 = arith.constant 0 : i32
    return %c0_i32, %arg0 : i32, i32
  }
}

</mosaic_0001>

<llo_original>
// kernel: tpu_custom_call.1
$region0: #{tpu_custom_call.1}
  #allocation0 [shape = 'u32[]', space=smem, size = 0x4, offset = 0x4, fixed_abs, tag = 'smem constant byte address 0x4 - core index']
  #allocation1 [shape = 'u32[144,128]{1,0:T(1,128)}', space=vmem, size = 0x12000, scoped, tag = 'internal scratch']
  %s0 = inlined_call_operand.hbm [shape: f32[8,128], index: 0, kind: input, shape index: {}]
  %s1 = inlined_call_operand.hbm [shape: f32[128,128], index: 1, kind: input, shape index: {}]
  %s2 = inlined_call_operand.vmem [shape: f32[1,128], index: 2, kind: input, shape index: {}]
  %s3 = inlined_call_operand.vmem [shape: f32[1,128], index: 3, kind: input, shape index: {}]
  %s4 = inlined_call_operand.hbm [shape: f32[8,128], index: 4, kind: output, shape index: {}]
  %s5 = sld [smem:[#allocation0]]
  $region46: #{tpu_custom_call.1} parent=0
    _
  %s7 = ssub.s32 1, %s5
  %s8 = scalar_select 0, %s7, %s5
  $region1: #{tpu_custom_call.1} parent=0
    #allocation2 [shape = 'u8[4096]{0}', space=vmem, size = 0x1000, scoped, tag = 'input window, operand 0, single buffered']
    #allocation3 [shape = 's32[1]{0}', space=sflag, size = 0x4, scoped, tag = 'scoped memory for tpu_custom_call.1']
    #allocation4 [shape = 's32[1]{0}', space=sflag, size = 0x4, scoped, tag = 'scoped memory for tpu_custom_call.1']
    #allocation5 [shape = 'u8[65536]{0}', space=vmem, size = 0x10000, scoped, tag = 'input window, operand 1, single buffered']
    #allocation6 [shape = 's32[1]{0}', space=sflag, size = 0x4, scoped, tag = 'scoped memory for tpu_custom_call.1']
    #allocation7 [shape = 'u8[4096]{0}', space=vmem, size = 0x1000, scoped, tag = 'output window, operand 0, single buffered']
    %9 = vsyncpa [#allocation3], 0
    %10 = vsyncpa [#allocation6], 0
    %11 = vsyncpa [#allocation4], 0
    // Predicated region
    $region2: #{tpu_custom_call.1} parent=1 // pred_check
      _
    $region3: #{tpu_custom_call.1} parent=1 // pred_check_branch
      %13 = sbr.rel (0) target = $region5
    $region4: #{tpu_custom_call.1} parent=1 // pred_region
      %s15 = ssub.s32 128, 128
      %16 = vsyncadd [#allocation3], %s15
      %s18 = sshll.u32 [#allocation2], 4
      %s19 = int_to_ptr.vmem [resolvable:$true] %s18
      %21 = dma.hbm_to_vmem [thread:$0]  %s0, 128, %s19, [#allocation3]
    $region5: #{tpu_custom_call.1} parent=1 // pred_fallthru
      _
    // Predicated region
    $region6: #{tpu_custom_call.1} parent=1 // pred_check
      _
    $region7: #{tpu_custom_call.1} parent=1 // pred_check_branch
      %23 = sbr.rel (0) target = $region9
    $region8: #{tpu_custom_call.1} parent=1 // pred_region
      %s25 = ssub.s32 2048, 2048
      %26 = vsyncadd [#allocation6], %s25
      %s27 = sshll.u32 [#allocation5], 4
      %s28 = int_to_ptr.vmem [resolvable:$true] %s27
      %33 = dma.hbm_to_vmem [thread:$0]  %s1, 2048, %s28, [#allocation6], 128, 128, 8
    $region9: #{tpu_custom_call.1} parent=1 // pred_fallthru
      _
    // Predicated region
    $region10: #{tpu_custom_call.1} parent=1 // pred_check
      _
    $region11: #{tpu_custom_call.1} parent=1 // pred_check_branch
      %35 = sbr.rel (0) target = $region13
    $region12: #{tpu_custom_call.1} parent=1 // pred_region
      _
    $region13: #{tpu_custom_call.1} parent=1 // pred_fallthru
      _
    // Predicated region
    $region14: #{tpu_custom_call.1} parent=1 // pred_check
      _
    $region15: #{tpu_custom_call.1} parent=1 // pred_check_branch
      %37 = sbr.rel (0) target = $region17
    $region16: #{tpu_custom_call.1} parent=1 // pred_region
      _
    $region17: #{tpu_custom_call.1} parent=1 // pred_fallthru
      _
    // Predicated region
    $region18: #{tpu_custom_call.1} parent=1 // pred_check
      _
    $region19: #{tpu_custom_call.1} parent=1 // pred_check_branch
      %39 = sbr.rel (0) target = $region21
    $region20: #{tpu_custom_call.1} parent=1 // pred_region
      %40 = dma.done [#allocation3], 128
    $region21: #{tpu_custom_call.1} parent=1 // pred_fallthru
      _
    // Predicated region
    $region22: #{tpu_custom_call.1} parent=1 // pred_check
      _
    $region23: #{tpu_custom_call.1} parent=1 // pred_check_branch
      %42 = sbr.rel (0) target = $region25
    $region24: #{tpu_custom_call.1} parent=1 // pred_region
      %43 = dma.done [#allocation6], 2048
    $region25: #{tpu_custom_call.1} parent=1 // pred_fallthru
      _
    %v44 = vld [vmem:[#allocation2] sm:$0xff]
    %v45 = vld [vmem:[#allocation5] sm:$0xff]
    %v46 = vld [vmem:[#allocation5 + $0x8] sm:$0xff]
    %v47 = vld [vmem:[#allocation5 + $0x10] sm:$0xff]
    %v48 = vld [vmem:[#allocation5 + $0x18] sm:$0xff]
    %v49 = vld [vmem:[#allocation5 + $0x20] sm:$0xff]
    %v50 = vld [vmem:[#allocation5 + $0x28] sm:$0xff]
    %v51 = vld [vmem:[#allocation5 + $0x30] sm:$0xff]
    %v52 = vld [vmem:[#allocation5 + $0x38] sm:$0xff]
    %v53 = vld [vmem:[#allocation5 + $0x40] sm:$0xff]
    %v54 = vld [vmem:[#allocation5 + $0x48] sm:$0xff]
    %v55 = vld [vmem:[#allocation5 + $0x50] sm:$0xff]
    %v56 = vld [vmem:[#allocation5 + $0x58] sm:$0xff]
    %v57 = vld [vmem:[#allocation5 + $0x60] sm:$0xff]
    %v58 = vld [vmem:[#allocation5 + $0x68] sm:$0xff]
    %v59 = vld [vmem:[#allocation5 + $0x70] sm:$0xff]
    %v60 = vld [vmem:[#allocation5 + $0x78] sm:$0xff]
    %61 = vmatprep.subr.mxu0 0.0
    %62 = vmatpush1.msra.mxu0 %v60
    %63 = vmatprep.subr.mxu0 0.0
    %64 = vmatpush1.msra.mxu0 %v59
    %65 = vmatprep.subr.mxu0 0.0
    %66 = vmatpush1.msra.mxu0 %v58
    %67 = vmatprep.subr.mxu0 0.0
    %68 = vmatpush1.msra.mxu0 %v57
    %69 = vmatprep.subr.mxu0 0.0
    %70 = vmatpush1.msra.mxu0 %v56
    %71 = vmatprep.subr.mxu0 0.0
    %72 = vmatpush1.msra.mxu0 %v55
    %73 = vmatprep.subr.mxu0 0.0
    %74 = vmatpush1.msra.mxu0 %v54
    %75 = vmatprep.subr.mxu0 0.0
    %76 = vmatpush1.msra.mxu0 %v53
    %77 = vmatprep.subr.mxu0 0.0
    %78 = vmatpush1.msra.mxu0 %v52
    %79 = vmatprep.subr.mxu0 0.0
    %80 = vmatpush1.msra.mxu0 %v51
    %81 = vmatprep.subr.mxu0 0.0
    %82 = vmatpush1.msra.mxu0 %v50
    %83 = vmatprep.subr.mxu0 0.0
    %84 = vmatpush1.msra.mxu0 %v49
    %85 = vmatprep.subr.mxu0 0.0
    %86 = vmatpush1.msra.mxu0 %v48
    %87 = vmatprep.subr.mxu0 0.0
    %88 = vmatpush1.msra.mxu0 %v47
    %89 = vmatprep.subr.mxu0 0.0
    %90 = vmatpush1.msra.mxu0 %v46
    %91 = vmatprep.subr.mxu0 0.0
    %92 = vmatpush1.msra.mxu0 %v45
    %93 = vmatprep.subr.mxu0 0.0
    %94 = vmatpush2.msra.mxu0 0.0
    %95 = vmatprep.subr.mxu0 0.0
    %96 = vmatpush2.msra.mxu0 0.0
    %97 = vmatprep.subr.mxu0 0.0
    %98 = vmatpush2.msra.mxu0 0.0
    %99 = vmatprep.subr.mxu0 0.0
    %100 = vmatpush2.msra.mxu0 0.0
    %101 = vmatprep.subr.mxu0 0.0
    %102 = vmatpush2.msra.mxu0 0.0
    %103 = vmatprep.subr.mxu0 0.0
    %104 = vmatpush2.msra.mxu0 0.0
    %105 = vmatprep.subr.mxu0 0.0
    %106 = vmatpush2.msra.mxu0 0.0
    %107 = vmatprep.subr.mxu0 0.0
    %108 = vmatpush2.msra.mxu0 0.0
    %109 = vmatprep.subr.mxu0 0.0
    %110 = vmatpush2.msra.mxu0 0.0
    %111 = vmatprep.subr.mxu0 0.0
    %112 = vmatpush2.msra.mxu0 0.0
    %113 = vmatprep.subr.mxu0 0.0
    %114 = vmatpush2.msra.mxu0 0.0
    %115 = vmatprep.subr.mxu0 0.0
    %116 = vmatpush2.msra.mxu0 0.0
    %117 = vmatprep.subr.mxu0 0.0
    %118 = vmatpush2.msra.mxu0 0.0
    %119 = vmatprep.subr.mxu0 0.0
    %120 = vmatpush2.msra.mxu0 0.0
    %121 = vmatprep.subr.mxu0 0.0
    %122 = vmatpush2.msra.mxu0 0.0
    %123 = vmatprep.subr.mxu0 0.0
    %124 = vmatpush2.msra.mxu0 0.0
    %125 = vmatprep.mubr.f32.mxu0 0.0
    %126 = vmatmul.mubr.f32.gmra.mxu0 %v44
    %v127 = vpop.f32.mrf.mxu0
    %v128 = vadd.f32 0.0, %v127
    %v129 = vpop.f32.mrf.mxu0
    %130 = vdwg.mxu0
    %p131 = scmp.eq.s32.totalorder 0, 0
    // Predicated region
    $region26: #{tpu_custom_call.1} parent=1 // pred_check
      %p132 = pneg %p131
    $region27: #{tpu_custom_call.1} parent=1 // pred_check_branch
      %134 = sbr.rel (%p132) target = $region29
    $region28: #{tpu_custom_call.1} parent=1 // pred_region
      %135 = vst [vmem:[#allocation7] sm:$0xff] %v128
    $region29: #{tpu_custom_call.1} parent=1 // pred_fallthru
      _
    %p136 = scmp.gt.s32.totalorder 0, 0
    // Predicated region
    $region30: #{tpu_custom_call.1} parent=1 // pred_check
      %p137 = pneg %p136
    $region31: #{tpu_custom_call.1} parent=1 // pred_check_branch
      %139 = sbr.rel (%p137) target = $region33
    $region32: #{tpu_custom_call.1} parent=1 // pred_region
      %v140 = vld [vmem:[#allocation7] sm:$0xff]
      %v141 = vadd.f32 %v140, %v128
      %142 = vst [vmem:[#allocation7] sm:$0xff] %v141
    $region33: #{tpu_custom_call.1} parent=1 // pred_fallthru
      _
    // Predicated region
    $region34: #{tpu_custom_call.1} parent=1 // pred_check
      %p143 = pneg %p131
    $region35: #{tpu_custom_call.1} parent=1 // pred_check_branch
      %145 = sbr.rel (%p143) target = $region37
    $region36: #{tpu_custom_call.1} parent=1 // pred_region
      %v146 = vld [vmem:[#allocation7] sm:$0xff]
      %v147 = vrot.slane %v146, 4
      %v148 = vadd.f32 %v146, %v147
      %v149 = vrot.slane %v148, 2
      %v150 = vadd.f32 %v148, %v149
      %v151 = vrot.slane %v150, 1
      %v152 = vadd.f32 %v150, %v151
      %v153 = vmul.f32 %v152, 0.125
      %v154 = vsub.f32 %v146, %v153
      %v155 = vmul.f32 %v154, %v154
      %v156 = vrot.slane %v155, 4
      %v157 = vadd.f32 %v155, %v156
      %v158 = vrot.slane %v157, 2
      %v159 = vadd.f32 %v157, %v158
      %v160 = vrot.slane %v159, 1
      %v161 = vadd.f32 %v159, %v160
      %v162 = vmul.f32 %v161, 0.125
      %v163 = vld [vmem:[%s2] sm:$0x1]
      %v164 = vadd.f32 %v162, 1e-05
      %v165 = vrsqrt.pop %v164
      %v166 = vmul.f32 %v163, %v165
      %v168 = vlaneseq
      %v169 = vshrl.u32 %v168, 7
      %v170 = vsub.s32 0, %v169
      %v171 = vrot.slane %v166, %v170
      %v173 = vmul.f32 %v154, %v171
      %v174 = vld [vmem:[%s3] sm:$0x1]
      %v176 = vlaneseq
      %v177 = vshrl.u32 %v176, 7
      %v178 = vsub.s32 0, %v177
      %v179 = vrot.slane %v174, %v178
      %v181 = vadd.f32 %v173, %v179
      %v182 = vmax.f32 %v181, 0.0
      %183 = vst [vmem:[#allocation7] sm:$0xff] %v182
    $region37: #{tpu_custom_call.1} parent=1 // pred_fallthru
      _
    // Predicated region
    $region38: #{tpu_custom_call.1} parent=1 // pred_check
      _
    $region39: #{tpu_custom_call.1} parent=1 // pred_check_branch
      %185 = sbr.rel (0) target = $region41
    $region40: #{tpu_custom_call.1} parent=1 // pred_region
      %s187 = ssub.s32 128, 128
      %188 = vsyncadd [#allocation4], %s187
      %s190 = sshll.u32 [#allocation7], 4
      %s191 = int_to_ptr.vmem [resolvable:$true] %s190
      %193 = dma.vmem_to_hbm [thread:$0]  %s191, 128, %s4, [#allocation4]
    $region41: #{tpu_custom_call.1} parent=1 // pred_fallthru
      _
    // Predicated region
    $region42: #{tpu_custom_call.1} parent=1 // pred_check
      _
    $region43: #{tpu_custom_call.1} parent=1 // pred_check_branch
      %195 = sbr.rel (0) target = $region45
    $region44: #{tpu_custom_call.1} parent=1 // pred_region
      %196 = dma.done [#allocation4], 128
    $region45: #{tpu_custom_call.1} parent=1 // pred_fallthru
      _
    %197 = vsyncpa [#allocation3], 1
    %198 = vsyncpa [#allocation6], 1
    %199 = vsyncpa [#allocation4], 1

</llo_original>
